<compile_context>
chip_gen: v7x
topology: tpu7x:2x2x1
jax: 0.10.0
libtpu: 0.0.40
codegen_flags: <defaults>
</compile_context>

<pallas_src>
import math
import functools

import jax
import jax.numpy as jnp
from jax.experimental import pallas as pl
from jax.experimental.pallas import tpu as pltpu

_EPS = 1e-12  # torch.nn.functional.normalize default eps


# --------------------------------------------------------------------------
# Phase 1: per-row target logit, margins, running-t update
# --------------------------------------------------------------------------
def _prepass_kernel(emb_ref, wlbl_ref, t_ref,
                    emb_n_ref, ctm_ref, fts_ref, tnew_ref,
                    *, cos_m, sin_m, threshold, mm, s):
    emb = emb_ref[...].astype(jnp.float32)          # (B, D)
    wl = wlbl_ref[...].astype(jnp.float32)          # (B, D) = kernel[:, label].T

    # F.normalize(embeddings, dim=1) and the label columns of F.normalize(kernel, dim=0)
    e_n = emb / jnp.maximum(
        jnp.sqrt(jnp.sum(emb * emb, axis=1, keepdims=True)), _EPS)
    w_n = wl / jnp.maximum(
        jnp.sqrt(jnp.sum(wl * wl, axis=1, keepdims=True)), _EPS)

    # target_logit = cos_theta[i, label[i]], clamped to [-1, 1]
    target = jnp.clip(jnp.sum(e_n * w_n, axis=1, keepdims=True), -1.0, 1.0)

    sin_t = jnp.sqrt(jnp.maximum(1.0 - target * target, 0.0))
    ctm = target * cos_m - sin_t * sin_m
    ft = jnp.where(target > threshold, ctm, target - mm)

    # running buffer: t = mean(target)*0.01 + 0.99*t  (updated BEFORE modulation)
    t_mean = jnp.mean(target, keepdims=True)                      # (1, 1)
    tnew_ref[...] = t_mean * 0.01 + 0.99 * t_ref[...]

    emb_n_ref[...] = e_n.astype(emb_n_ref.dtype)                  # bf16 feed for MXU
    ctm_ref[...] = ctm
    fts_ref[...] = ft * s                                         # pre-scaled margin logit


# --------------------------------------------------------------------------
# Phase 2: C-tiled matmul + hard-example modulation + margin scatter
# --------------------------------------------------------------------------
def _tile_kernel(emb_n_ref, w_ref, invn_ref, label_ref, ctm_ref, fts_ref, t_ref,
                 out_ref, *maybe_orig_ref, s, tn):
    j = pl.program_id(0)

    # bf16 MXU matmul, f32 accumulation; column norm applied after the matmul
    # (<e, w_c>/||w_c|| == <e, w_c/||w_c||>, but only B*TN scaling muls).
    cos = jnp.dot(emb_n_ref[...], w_ref[...],
                  preferred_element_type=jnp.float32)             # (B, TN)
    cos = jnp.clip(cos * invn_ref[...], -1.0, 1.0)

    b = cos.shape[0]
    col = jax.lax.broadcasted_iota(jnp.int32, (b, tn), 1)
    onehot = col == (label_ref[...] - j * tn)                     # (B,1) subtract, (B,TN) cmp

    t_new = t_ref[...]                                            # (1, 1) updated running t
    cs = cos * s                                                  # reused by all branches
    mask = cos > ctm_ref[...]                                     # hard-example mask
    modulated = jnp.where(mask, cs * (t_new + cos), cs)
    out_ref[...] = jnp.where(onehot, fts_ref[...], modulated).astype(out_ref.dtype)
    if maybe_orig_ref:
        maybe_orig_ref[0][...] = cs.astype(maybe_orig_ref[0].dtype)


# --------------------------------------------------------------------------
# Tile / VMEM budgeting helpers
# --------------------------------------------------------------------------
def _vmem_budget():
    try:
        cap = pltpu.get_tpu_info().vmem_capacity_bytes
    except Exception:
        cap = 64 << 20            # be conservative: v7x per-TensorCore capacity
    return int(cap) * 3 // 4      # leave headroom for compiler scratch / spills


def _pick_tn(requested, C, B, D, w_bytes, out_bytes, n_out, budget):
    if C <= 128:
        return C
    # Bytes that do not scale with TN (resident bf16 embeddings, small scalars, slack).
    fixed = 2 * B * D * 2 + 8 * B * 4 + (4 << 20)
    # Per-class-column bytes of the double-buffered pipeline:
    # weight tile + inv-norm tile + n_out output tiles.
    per_col = 2 * (D * w_bytes + 4 + n_out * B * out_bytes)
    max_tn = max(128, (budget - fixed) // per_col)
    tn = max(128, (min(requested, C, max_tn) // 128) * 128)
    # Prefer a tile that divides C so the last tile is not ragged (avoids OOB
    # weight reads and masked partial stores); never shrink by more than 2x.
    for cand in range(tn, max(127, tn // 2 - 1), -128):
        if C % cand == 0:
            return cand
    return tn  # ragged last tile: OOB lanes are garbage but their stores are masked


# --------------------------------------------------------------------------
# Wrapper
# --------------------------------------------------------------------------
def curricular_face(embeddings, kernel, label, t, *, m=0.5, s=64.0,
                    tn=1024, mxu_dtype=jnp.bfloat16, out_dtype=jnp.bfloat16,
                    return_origin=True, weight_buffers=2):
    """Returns (output, origin_cos * s, t_new) matching CurricularFace.forward.

    `out_dtype=bf16` halves the dominant (B, C) writeback stream; pass
    `out_dtype=jnp.float32` for bit-heavier but exact-f32 outputs.
    """
    B, D = embeddings.shape
    D2, C = kernel.shape
    assert D == D2

    cos_m = math.cos(m)
    sin_m = math.sin(m)
    threshold = math.cos(math.pi - m)
    mm = math.sin(math.pi - m) * m

    label = label.reshape(B).astype(jnp.int32)
    label2d = label.reshape(B, 1)
    t2d = jnp.asarray(t, jnp.float32).reshape(1, 1)

    # ---------------- Phase 1 -------------------------------------------
    # Gather only the B label columns of the weight (B*D elements, negligible
    # next to the D*C weight stream) and run the tiny pre-pass kernel.
    # TODO(synk): fold this gather into Phase 1 via scalar-prefetch + pl.Element
    # row gather to avoid the small XLA gather/transpose round trip.
    w_lbl = jnp.take(kernel, label, axis=1).T                     # (B, D)

    vmem = pl.BlockSpec(memory_space=pltpu.MemorySpace.VMEM)
    prepass = functools.partial(_prepass_kernel, cos_m=cos_m, sin_m=sin_m,
                                threshold=threshold, mm=mm, s=s)
    emb_n, ctm, fts, t_new = pl.pallas_call(
        prepass,
        out_shape=(jax.ShapeDtypeStruct((B, D), mxu_dtype),
                   jax.ShapeDtypeStruct((B, 1), jnp.float32),
                   jax.ShapeDtypeStruct((B, 1), jnp.float32),
                   jax.ShapeDtypeStruct((1, 1), jnp.float32)),
        in_specs=[vmem, vmem, vmem],
        out_specs=(vmem, vmem, vmem, vmem),
    )(embeddings, w_lbl, t2d)

    # One-time weight slimming: bf16 copy for the MXU stream + f32 column
    # inverse-norms (XLA fuses both into a single pass over the f32 master).
    w_mxu = kernel if kernel.dtype == mxu_dtype else kernel.astype(mxu_dtype)
    kf = kernel.astype(jnp.float32)
    inv_norm = 1.0 / jnp.maximum(
        jnp.sqrt(jnp.sum(kf * kf, axis=0, keepdims=True)), _EPS)  # (1, C) f32

    # ---------------- Phase 2 -------------------------------------------
    w_bytes = jnp.dtype(mxu_dtype).itemsize
    out_bytes = jnp.dtype(out_dtype).itemsize
    n_out = 2 if return_origin else 1
    budget = _vmem_budget()
    tn = _pick_tn(tn, C, B, D, w_bytes, out_bytes, n_out, budget)
    num_tiles = pl.cdiv(C, tn)

    footprint = (2 * B * D * 2 + 8 * B * 4
                 + max(weight_buffers, 2) * D * tn * w_bytes
                 + 2 * tn * 4
                 + n_out * 2 * B * tn * out_bytes)
    vmem_limit = int(min(max(footprint + (4 << 20), 16 << 20), budget))

    rep = lambda shape: pl.BlockSpec(shape, lambda j: (0, 0))      # replicated (DMA'd once)
    if weight_buffers == 2:
        w_spec = pl.BlockSpec((D, tn), lambda j: (0, j))
    else:  # e.g. Buffered(3) on v5e to keep the low-BW DMA engine saturated
        w_spec = pl.BlockSpec((D, tn), lambda j: (0, j),
                              pipeline_mode=pl.Buffered(weight_buffers))
    in_specs = [
        rep((B, D)),                                  # emb_n  (bf16, resident)
        w_spec,                                       # weight tile (bf16, streamed)
        pl.BlockSpec((1, tn), lambda j: (0, j)),      # precomputed 1/||w_c|| (f32)
        rep((B, 1)),                                  # label
        rep((B, 1)),                                  # cos_theta_m
        rep((B, 1)),                                  # s * final_target_logit
        rep((1, 1)),                                  # t_new
    ]
    out_block = pl.BlockSpec((B, tn), lambda j: (0, j))
    if return_origin:
        out_specs = (out_block, out_block)
        out_shape = (jax.ShapeDtypeStruct((B, C), out_dtype),
                     jax.ShapeDtypeStruct((B, C), out_dtype))
    else:
        out_specs = out_block
        out_shape = jax.ShapeDtypeStruct((B, C), out_dtype)

    tile_kern = functools.partial(_tile_kernel, s=s, tn=tn)
    result = pl.pallas_call(
        tile_kern,
        grid=(num_tiles,),
        out_shape=out_shape,
        in_specs=in_specs,
        out_specs=out_specs,
        compiler_params=pltpu.CompilerParams(
            dimension_semantics=("parallel",),       # shard C tiles on v7x megacore
            vmem_limit_bytes=vmem_limit),
    )(emb_n, w_mxu, inv_norm, label2d, ctm, fts, t_new)

    if return_origin:
        out, orig = result
        return out, orig, t_new
    return result, t_new


# --------------------------------------------------------------------------
# Pure-JAX reference (mirrors the PyTorch forward; mxu_dtype lets the test
# replicate the kernel's bf16 MXU feed for a tight comparison)
# --------------------------------------------------------------------------
def _reference(embeddings, kernel, label, t, *, m=0.5, s=64.0,
               mxu_dtype=jnp.float32):
    cos_m, sin_m = math.cos(m), math.sin(m)
    threshold = math.cos(math.pi - m)
    mm = math.sin(math.pi - m) * m
    eps = 1e-12
    e32 = embeddings.astype(jnp.float32)
    w32 = kernel.astype(jnp.float32)
    e_n = e32 / jnp.maximum(jnp.linalg.norm(e32, axis=1, keepdims=True), eps)
    w_inv = 1.0 / jnp.maximum(jnp.linalg.norm(w32, axis=0, keepdims=True), eps)
    cos = jnp.clip(jnp.dot(e_n.astype(mxu_dtype), kernel.astype(mxu_dtype),
                           preferred_element_type=jnp.float32) * w_inv,
                   -1.0, 1.0)
    origin = cos
    # target logit via the f32 per-row path (same as the pre-pass kernel)
    w_lbl = jnp.take(w32, label, axis=1).T
    w_lbl_n = w_lbl / jnp.maximum(
        jnp.linalg.norm(w_lbl, axis=1, keepdims=True), eps)
    target = jnp.clip(jnp.sum(e_n * w_lbl_n, axis=1, keepdims=True), -1.0, 1.0)
    sin_t = jnp.sqrt(jnp.maximum(1.0 - target ** 2, 0.0))
    ctm = target * cos_m - sin_t * sin_m
    ft = jnp.where(target > threshold, ctm, target - mm)
    t_new = jnp.mean(target) * 0.01 + 0.99 * t
    cos = jnp.where(cos > ctm, cos * (t_new + cos), cos)
    onehot = jax.nn.one_hot(label, cos.shape[1], dtype=bool)
    cos = jnp.where(onehot, ft, cos)
    return cos * s, origin * s, t_new


if __name__ == "__main__":
    key = jax.random.PRNGKey(0)
    k_emb, k_w, k_lbl = jax.random.split(key, 3)

    B, D, C = 8, 128, 1024      # batch, in_features, out_features (small but lane-dense)
    TN = 256                    # class-dimension tile (multiple of 128) -> 4 grid steps

    embeddings = jax.random.normal(k_emb, (B, D), dtype=jnp.float32)
    kernel = 0.01 * jax.random.normal(k_w, (D, C), dtype=jnp.float32)  # nn.init.normal_(std=0.01)
    label = jax.random.randint(k_lbl, (B,), 0, C, dtype=jnp.int32)
    t_buf = jnp.zeros((1,), jnp.float32)  # register_buffer('t', torch.zeros(1))

    # performance-default path: bf16 weight stream + bf16 outputs
    out, orig, t_new = curricular_face(embeddings, kernel, label, t_buf[0], tn=TN)
    jax.block_until_ready((out, orig, t_new))

    # sanity check against a pure-JAX reference using the same bf16 MXU feed
    ref_out, ref_orig, ref_t = _reference(embeddings, kernel, label, t_buf[0],
                                          mxu_dtype=jnp.bfloat16)

    def _close_frac(a, b, rtol, atol):
        a = a.astype(jnp.float32)
        b = b.astype(jnp.float32)
        return float(jnp.mean(
            (jnp.abs(a - b) <= atol + rtol * jnp.abs(b)).astype(jnp.float32)))

    # bf16 output rounding + accumulation-order diffs; allow a tiny fraction of
    # mismatches right on the hard-example mask boundary
    assert _close_frac(out, ref_out, 1e-2, 2e-2) >= 0.999, "output mismatch"
    assert _close_frac(orig, ref_orig, 1e-2, 2e-2) >= 0.999, "origin_cos mismatch"
    assert abs(float(t_new[0, 0]) - float(ref_t)) < 1e-5, "t mismatch"

    # the margin/target path is fully f32 -> check the label columns tightly
    # with f32 outputs requested
    out32, _, _ = curricular_face(embeddings, kernel, label, t_buf[0], tn=TN,
                                  out_dtype=jnp.float32)
    jax.block_until_ready(out32)
    ref_out32, _, _ = _reference(embeddings, kernel, label, t_buf[0])
    rows = jnp.arange(B)
    assert jnp.allclose(out32[rows, label], ref_out32[rows, label],
                        rtol=1e-4, atol=1e-3), "target-logit column mismatch"

    print("KERNEL_OK")
</pallas_src>

<mosaic_0001>
module attributes {stable_mosaic.version = 11 : i64} {
  func.func @_prepass_kernel(%arg0: memref<8x128xf32, #tpu.memory_space<vmem>>, %arg1: memref<8x128xf32, #tpu.memory_space<vmem>>, %arg2: memref<1x1xf32, #tpu.memory_space<vmem>>, %arg3: memref<8x128xbf16, #tpu.memory_space<vmem>>, %arg4: memref<8x1xf32, #tpu.memory_space<vmem>>, %arg5: memref<8x1xf32, #tpu.memory_space<vmem>>, %arg6: memref<1x1xf32, #tpu.memory_space<vmem>>) attributes {dimension_semantics = [], scalar_prefetch = 0 : i64, scratch_operands = 0 : i64, tpu.core_type = #tpu.core_type<tc>} {
    %c0 = arith.constant 0 : index
    %c0_0 = arith.constant 0 : index
    %0 = vector.load %arg0[%c0, %c0_0] : memref<8x128xf32, #tpu.memory_space<vmem>>, vector<8x128xf32>
    %c0_1 = arith.constant 0 : index
    %c0_2 = arith.constant 0 : index
    %1 = vector.load %arg1[%c0_1, %c0_2] : memref<8x128xf32, #tpu.memory_space<vmem>>, vector<8x128xf32>
    %2 = arith.mulf %0, %0 : vector<8x128xf32>
    %cst = arith.constant dense<0.000000e+00> : vector<8xf32>
    %3 = vector.multi_reduction <add>, %2, %cst [1] : vector<8x128xf32> to vector<8xf32>
    %4 = vector.shape_cast %3 : vector<8xf32> to vector<8x1xf32>
    %5 = math.sqrt %4 : vector<8x1xf32>
    %cst_3 = arith.constant 9.99999996E-13 : f32
    %6 = vector.broadcast %cst_3 : f32 to vector<8x1xf32>
    %7 = arith.maximumf %5, %6 : vector<8x1xf32>
    %8 = vector.broadcast %7 : vector<8x1xf32> to vector<8x128xf32>
    %9 = arith.divf %0, %8 : vector<8x128xf32>
    %10 = arith.mulf %1, %1 : vector<8x128xf32>
    %cst_4 = arith.constant dense<0.000000e+00> : vector<8xf32>
    %11 = vector.multi_reduction <add>, %10, %cst_4 [1] : vector<8x128xf32> to vector<8xf32>
    %12 = vector.shape_cast %11 : vector<8xf32> to vector<8x1xf32>
    %13 = math.sqrt %12 : vector<8x1xf32>
    %cst_5 = arith.constant 9.99999996E-13 : f32
    %14 = vector.broadcast %cst_5 : f32 to vector<8x1xf32>
    %15 = arith.maximumf %13, %14 : vector<8x1xf32>
    %16 = vector.broadcast %15 : vector<8x1xf32> to vector<8x128xf32>
    %17 = arith.divf %1, %16 : vector<8x128xf32>
    %18 = arith.mulf %9, %17 : vector<8x128xf32>
    %cst_6 = arith.constant dense<0.000000e+00> : vector<8xf32>
    %19 = vector.multi_reduction <add>, %18, %cst_6 [1] : vector<8x128xf32> to vector<8xf32>
    %20 = vector.shape_cast %19 : vector<8xf32> to vector<8x1xf32>
    %cst_7 = arith.constant -1.000000e+00 : f32
    %cst_8 = arith.constant 1.000000e+00 : f32
    %21 = vector.broadcast %cst_7 : f32 to vector<8x1xf32>
    %22 = arith.maximumf %21, %20 : vector<8x1xf32>
    %23 = vector.broadcast %cst_8 : f32 to vector<8x1xf32>
    %24 = arith.minimumf %23, %22 : vector<8x1xf32>
    %25 = arith.mulf %24, %24 : vector<8x1xf32>
    %cst_9 = arith.constant 1.000000e+00 : f32
    %26 = vector.broadcast %cst_9 : f32 to vector<8x1xf32>
    %27 = arith.subf %26, %25 : vector<8x1xf32>
    %cst_10 = arith.constant 0.000000e+00 : f32
    %28 = vector.broadcast %cst_10 : f32 to vector<8x1xf32>
    %29 = arith.maximumf %27, %28 : vector<8x1xf32>
    %30 = math.sqrt %29 : vector<8x1xf32>
    %cst_11 = arith.constant 0.87758255 : f32
    %31 = vector.broadcast %cst_11 : f32 to vector<8x1xf32>
    %32 = arith.mulf %24, %31 : vector<8x1xf32>
    %cst_12 = arith.constant 0.47942555 : f32
    %33 = vector.broadcast %cst_12 : f32 to vector<8x1xf32>
    %34 = arith.mulf %30, %33 : vector<8x1xf32>
    %35 = arith.subf %32, %34 : vector<8x1xf32>
    %cst_13 = arith.constant -0.87758255 : f32
    %36 = vector.broadcast %cst_13 : f32 to vector<8x1xf32>
    %37 = arith.cmpf ogt, %24, %36 : vector<8x1xf32>
    %cst_14 = arith.constant 0.239712775 : f32
    %38 = vector.broadcast %cst_14 : f32 to vector<8x1xf32>
    %39 = arith.subf %24, %38 : vector<8x1xf32>
    %40 = arith.select %37, %35, %39 : vector<8x1xi1>, vector<8x1xf32>
    %41 = vector.shape_cast %24 : vector<8x1xf32> to vector<1x8x1xf32>
    %cst_15 = arith.constant dense<0.000000e+00> : vector<1xf32>
    %42 = vector.multi_reduction <add>, %41, %cst_15 [1, 2] : vector<1x8x1xf32> to vector<1xf32>
    %43 = vector.shape_cast %42 : vector<1xf32> to vector<1x1x1xf32>
    %44 = vector.extract %43[0, 0, 0] : f32 from vector<1x1x1xf32>
    %45 = vector.broadcast %44 : f32 to vector<1x1xf32>
    %cst_16 = arith.constant 8.000000e+00 : f32
    %46 = vector.broadcast %cst_16 : f32 to vector<1x1xf32>
    %47 = arith.divf %45, %46 : vector<1x1xf32>
    %cst_17 = arith.constant 0.00999999977 : f32
    %48 = vector.broadcast %cst_17 : f32 to vector<1x1xf32>
    %49 = arith.mulf %47, %48 : vector<1x1xf32>
    %c0_18 = arith.constant 0 : index
    %c0_19 = arith.constant 0 : index
    %50 = vector.load %arg2[%c0_18, %c0_19] : memref<1x1xf32, #tpu.memory_space<vmem>>, vector<1x1xf32>
    %cst_20 = arith.constant 9.900000e-01 : f32
    %51 = vector.broadcast %cst_20 : f32 to vector<1x1xf32>
    %52 = arith.mulf %51, %50 : vector<1x1xf32>
    %53 = arith.addf %49, %52 : vector<1x1xf32>
    %c0_21 = arith.constant 0 : index
    %c0_22 = arith.constant 0 : index
    %54 = vector.load %arg6[%c0_21, %c0_22] : memref<1x1xf32, #tpu.memory_space<vmem>>, vector<1x1xf32>
    tpu.vector_store %arg6[%c0_21, %c0_22], %53 {strides = array<i32>} : memref<1x1xf32, #tpu.memory_space<vmem>>, vector<1x1xf32>,
    %55 = arith.truncf %9 : vector<8x128xf32> to vector<8x128xbf16>
    %c0_23 = arith.constant 0 : index
    %c0_24 = arith.constant 0 : index
    %56 = vector.load %arg3[%c0_23, %c0_24] : memref<8x128xbf16, #tpu.memory_space<vmem>>, vector<8x128xbf16>
    tpu.vector_store %arg3[%c0_23, %c0_24], %55 {strides = array<i32>} : memref<8x128xbf16, #tpu.memory_space<vmem>>, vector<8x128xbf16>,
    %c0_25 = arith.constant 0 : index
    %c0_26 = arith.constant 0 : index
    %57 = vector.load %arg4[%c0_25, %c0_26] : memref<8x1xf32, #tpu.memory_space<vmem>>, vector<8x1xf32>
    tpu.vector_store %arg4[%c0_25, %c0_26], %35 {strides = array<i32>} : memref<8x1xf32, #tpu.memory_space<vmem>>, vector<8x1xf32>,
    %cst_27 = arith.constant 6.400000e+01 : f32
    %58 = vector.broadcast %cst_27 : f32 to vector<8x1xf32>
    %59 = arith.mulf %40, %58 : vector<8x1xf32>
    %c0_28 = arith.constant 0 : index
    %c0_29 = arith.constant 0 : index
    %60 = vector.load %arg5[%c0_28, %c0_29] : memref<8x1xf32, #tpu.memory_space<vmem>>, vector<8x1xf32>
    tpu.vector_store %arg5[%c0_28, %c0_29], %59 {strides = array<i32>} : memref<8x1xf32, #tpu.memory_space<vmem>>, vector<8x1xf32>,
    return
  }
}

</mosaic_0001>

<llo_original>
// kernel: tpu_custom_call.1
$region0: #{tpu_custom_call.1}
  #allocation0 [shape = 'u32[]', space=smem, size = 0x4, offset = 0x4, fixed_abs, tag = 'smem constant byte address 0x4 - core index']
  #allocation1 [shape = 'u32[144,128]{1,0:T(1,128)}', space=vmem, size = 0x12000, scoped, tag = 'internal scratch']
  #allocation2 [shape = 'f32[1,1]{1,0:T(1,128)S(1)}', space=vmem, size = 0x200, scoped, tag = 'scoped memory for tpu_custom_call.1']
  %s0 = inlined_call_operand.hbm [shape: f32[8,128], index: 0, kind: input, shape index: {}]
  %s1 = inlined_call_operand.hbm [shape: f32[8,128], index: 1, kind: input, shape index: {}]
  %s2 = inlined_call_operand.<no memory space> [shape: f32[1,1], index: 2, kind: input, shape index: {}]
  %s3 = inlined_call_operand.hbm [shape: bf16[8,128], index: 3, kind: output, shape index: {0}]
  %s4 = inlined_call_operand.vmem [shape: f32[8,1], index: 4, kind: output, shape index: {1}]
  %s5 = inlined_call_operand.vmem [shape: f32[8,1], index: 5, kind: output, shape index: {2}]
  %s6 = inlined_call_operand.hbm [shape: f32[1,1], index: 6, kind: output, shape index: {3}]
  %7 = xla_tuple %s3, %s4, %s5, %s6
  %s8 = sld [smem:[#allocation0]]
  $region54: #{tpu_custom_call.1} parent=0
    _
  %s10 = ssub.s32 1, %s8
  %s11 = scalar_select 0, %s10, %s8
  %v12 = vstv %s2
  %13 = vst [vmem:[#allocation2] sm:$0x1] %v12
  $region1: #{tpu_custom_call.1} parent=0
    #allocation3 [shape = 'u8[4096]{0}', space=vmem, size = 0x1000, scoped, tag = 'input window, operand 0, single buffered']
    #allocation4 [shape = 's32[1]{0}', space=sflag, size = 0x4, scoped, tag = 'scoped memory for tpu_custom_call.1']
    #allocation5 [shape = 's32[1]{0}', space=sflag, size = 0x4, scoped, tag = 'scoped memory for tpu_custom_call.1']
    #allocation6 [shape = 'u8[4096]{0}', space=vmem, size = 0x1000, scoped, tag = 'input window, operand 1, single buffered']
    #allocation7 [shape = 's32[1]{0}', space=sflag, size = 0x4, scoped, tag = 'scoped memory for tpu_custom_call.1']
    #allocation8 [shape = 'u8[2048]{0}', space=vmem, size = 0x800, scoped, tag = 'output window, operand 0, single buffered']
    #allocation9 [shape = 'u8[512]{0}', space=vmem, size = 0x400, scoped, tag = 'output window, operand 3, single buffered']
    #allocation10 [shape = 's32[1]{0}', space=sflag, size = 0x4, scoped, tag = 'scoped memory for tpu_custom_call.1']
    %14 = vsyncpa [#allocation4], 0
    %15 = vsyncpa [#allocation7], 0
    %16 = vsyncpa [#allocation5], 0
    %17 = vsyncpa [#allocation10], 0
    // Predicated region
    $region2: #{tpu_custom_call.1} parent=1 // pred_check
      _
    $region3: #{tpu_custom_call.1} parent=1 // pred_check_branch
      %19 = sbr.rel (0) target = $region5
    $region4: #{tpu_custom_call.1} parent=1 // pred_region
      %s21 = ssub.s32 128, 128
      %22 = vsyncadd [#allocation4], %s21
      %s24 = sshll.u32 [#allocation3], 4
      %s25 = int_to_ptr.vmem [resolvable:$true] %s24
      %27 = dma.hbm_to_vmem [thread:$0]  %s0, 128, %s25, [#allocation4]
    $region5: #{tpu_custom_call.1} parent=1 // pred_fallthru
      _
    // Predicated region
    $region6: #{tpu_custom_call.1} parent=1 // pred_check
      _
    $region7: #{tpu_custom_call.1} parent=1 // pred_check_branch
      %29 = sbr.rel (0) target = $region9
    $region8: #{tpu_custom_call.1} parent=1 // pred_region
      %s31 = ssub.s32 128, 128
      %32 = vsyncadd [#allocation7], %s31
      %s34 = sshll.u32 [#allocation6], 4
      %s35 = int_to_ptr.vmem [resolvable:$true] %s34
      %37 = dma.hbm_to_vmem [thread:$0]  %s1, 128, %s35, [#allocation7]
    $region9: #{tpu_custom_call.1} parent=1 // pred_fallthru
      _
    // Predicated region
    $region10: #{tpu_custom_call.1} parent=1 // pred_check
      _
    $region11: #{tpu_custom_call.1} parent=1 // pred_check_branch
      %39 = sbr.rel (0) target = $region13
    $region12: #{tpu_custom_call.1} parent=1 // pred_region
      _
    $region13: #{tpu_custom_call.1} parent=1 // pred_fallthru
      _
    // Predicated region
    $region14: #{tpu_custom_call.1} parent=1 // pred_check
      _
    $region15: #{tpu_custom_call.1} parent=1 // pred_check_branch
      %41 = sbr.rel (0) target = $region17
    $region16: #{tpu_custom_call.1} parent=1 // pred_region
      %42 = dma.done [#allocation4], 128
    $region17: #{tpu_custom_call.1} parent=1 // pred_fallthru
      _
    // Predicated region
    $region18: #{tpu_custom_call.1} parent=1 // pred_check
      _
    $region19: #{tpu_custom_call.1} parent=1 // pred_check_branch
      %44 = sbr.rel (0) target = $region21
    $region20: #{tpu_custom_call.1} parent=1 // pred_region
      %45 = dma.done [#allocation7], 128
    $region21: #{tpu_custom_call.1} parent=1 // pred_fallthru
      _
    %v46 = vld [vmem:[#allocation3] sm:$0xff]
    %v47 = vld [vmem:[#allocation6] sm:$0xff]
    %v48 = vmul.f32 %v46, %v46
    %49 = vadd.xlane.f32.xlu0 %v48
    %v50 = vpop.xlane.xlu0 %49
    %v51 = vrsqrt.pop %v50
    %v52 = vmul.f32 %v50, %v51
    %vm53 = vcmp.eq.f32.partialorder %v50, inf
    %v54 = vsel %vm53, %v50, %v52
    %vm55 = vcmp.eq.f32.partialorder %v50, 0.0
    %v56 = vand.u32 %v50, 2147483648
    %v57 = vsel %vm55, %v56, %v54
    %v58 = vmax.f32 %v57, 1e-12
    %v59 = vrcp.pop %v58
    %v60 = vmul.f32 %v46, %v59
    %v61 = vmul.f32 %v47, %v47
    %62 = vadd.xlane.f32.xlu0 %v61
    %v63 = vpop.xlane.xlu0 %62
    %v64 = vrsqrt.pop %v63
    %v65 = vmul.f32 %v63, %v64
    %vm66 = vcmp.eq.f32.partialorder %v63, inf
    %v67 = vsel %vm66, %v63, %v65
    %vm68 = vcmp.eq.f32.partialorder %v63, 0.0
    %v69 = vand.u32 %v63, 2147483648
    %v70 = vsel %vm68, %v69, %v67
    %v71 = vmax.f32 %v70, 1e-12
    %v72 = vrcp.pop %v71
    %v73 = vmul.f32 %v47, %v72
    %v74 = vmul.f32 %v60, %v73
    %75 = vadd.xlane.f32.xlu0 %v74
    %v76 = vpop.xlane.xlu0 %75
    %v77 = vmax.f32 %v76, -1.0
    %v78 = vmin.f32 %v77, 1.0
    %v79 = vmul.f32 %v78, %v78
    %v80 = vsub.f32 1.0, %v79
    %v81 = vmax.f32 %v80, 0.0
    %v82 = vrsqrt.pop %v81
    %v83 = vmul.f32 %v81, %v82
    %vm84 = vcmp.eq.f32.partialorder %v81, inf
    %v85 = vsel %vm84, %v81, %v83
    %vm86 = vcmp.eq.f32.partialorder %v81, 0.0
    %v87 = vand.u32 %v81, 2147483648
    %v88 = vsel %vm86, %v87, %v85
    %v89 = vmul.f32 %v78, 0.87758255
    %v90 = vmul.f32 %v88, 0.47942555
    %v91 = vsub.f32 %v89, %v90
    %vm92 = vcmp.gt.f32.partialorder %v78, -0.87758255
    %v93 = vsub.f32 %v78, 0.23971277
    %v94 = vsel %vm92, %v91, %v93
    %vm95 = vcmask 7168
    %v96 = vsel %vm95, %v78, 0.0
    %97 = vadd.xlane.f32.xlu0 %v96
    %v98 = vpop.xlane.xlu0 %97
    %v99 = vrot.slane %v98, 4
    %v100 = vadd.f32 %v98, %v99
    %v101 = vrot.slane %v100, 2
    %v102 = vadd.f32 %v100, %v101
    %v103 = vrot.slane %v102, 1
    %v104 = vadd.f32 %v102, %v103
    %s105 = vtos %v104
    %v106 = vstv %s105
    %v107 = vrcp.pop 8.0
    %v108 = vmul.f32 %v106, %v107
    %v109 = vmul.f32 %v108, 0.01
    %v110 = vld [vmem:[#allocation2] sm:$0x1]
    %v111 = vmul.f32 %v110, 0.99
    %v112 = vadd.f32 %v109, %v111
    %vm113 = vcmask 0
    %114 = vst.msk [vmem:[#allocation9] sm:$0x1] %vm113, %v112
    %v115 = vpack.c.bf16 %v60, %v60
    %116 = vst [vmem:[#allocation8] sm:$0xf] %v115
    %117 = vst.msk [vmem:[%s4] sm:$0xff] %vm95, %v91
    %v118 = vmul.f32 %v94, 64.0
    %119 = vst.msk [vmem:[%s5] sm:$0xff] %vm95, %v118
    // Predicated region
    $region22: #{tpu_custom_call.1} parent=1 // pred_check
      _
    $region23: #{tpu_custom_call.1} parent=1 // pred_check_branch
      %121 = sbr.rel (0) target = $region25
    $region24: #{tpu_custom_call.1} parent=1 // pred_region
      %s123 = ssub.s32 64, 64
      %124 = vsyncadd [#allocation5], %s123
      %s126 = sshll.u32 [#allocation8], 4
      %s127 = int_to_ptr.vmem [resolvable:$true] %s126
      %129 = dma.vmem_to_hbm [thread:$0]  %s127, 64, %s3, [#allocation5]
    $region25: #{tpu_custom_call.1} parent=1 // pred_fallthru
      _
    // Predicated region
    $region26: #{tpu_custom_call.1} parent=1 // pred_check
      _
    $region27: #{tpu_custom_call.1} parent=1 // pred_check_branch
      %131 = sbr.rel (0) target = $region29
    $region28: #{tpu_custom_call.1} parent=1 // pred_region
      _
    $region29: #{tpu_custom_call.1} parent=1 // pred_fallthru
      _
    // Predicated region
    $region30: #{tpu_custom_call.1} parent=1 // pred_check
      _
    $region31: #{tpu_custom_call.1} parent=1 // pred_check_branch
      %133 = sbr.rel (0) target = $region33
    $region32: #{tpu_custom_call.1} parent=1 // pred_region
      _
    $region33: #{tpu_custom_call.1} parent=1 // pred_fallthru
      _
    // Predicated region
    $region34: #{tpu_custom_call.1} parent=1 // pred_check
      _
    $region35: #{tpu_custom_call.1} parent=1 // pred_check_branch
      %135 = sbr.rel (0) target = $region37
    $region36: #{tpu_custom_call.1} parent=1 // pred_region
      %s137 = ssub.s32 16, 16
      %138 = vsyncadd [#allocation10], %s137
      %s140 = sshll.u32 [#allocation9], 4
      %s141 = int_to_ptr.vmem [resolvable:$true] %s140
      %143 = dma.vmem_to_hbm [thread:$0]  %s141, 16, %s6, [#allocation10]
    $region37: #{tpu_custom_call.1} parent=1 // pred_fallthru
      _
    // Predicated region
    $region38: #{tpu_custom_call.1} parent=1 // pred_check
      _
    $region39: #{tpu_custom_call.1} parent=1 // pred_check_branch
      %145 = sbr.rel (0) target = $region41
    $region40: #{tpu_custom_call.1} parent=1 // pred_region
      %146 = dma.done [#allocation5], 64
    $region41: #{tpu_custom_call.1} parent=1 // pred_fallthru
      _
    // Predicated region
    $region42: #{tpu_custom_call.1} parent=1 // pred_check
      _
    $region43: #{tpu_custom_call.1} parent=1 // pred_check_branch
      %148 = sbr.rel (0) target = $region45
    $region44: #{tpu_custom_call.1} parent=1 // pred_region
      _
    $region45: #{tpu_custom_call.1} parent=1 // pred_fallthru
      _
    // Predicated region
    $region46: #{tpu_custom_call.1} parent=1 // pred_check
      _
    $region47: #{tpu_custom_call.1} parent=1 // pred_check_branch
      %150 = sbr.rel (0) target = $region49
    $region48: #{tpu_custom_call.1} parent=1 // pred_region
      _
    $region49: #{tpu_custom_call.1} parent=1 // pred_fallthru
      _
    // Predicated region
    $region50: #{tpu_custom_call.1} parent=1 // pred_check
      _
    $region51: #{tpu_custom_call.1} parent=1 // pred_check_branch
      %152 = sbr.rel (0) target = $region53
    $region52: #{tpu_custom_call.1} parent=1 // pred_region
      %153 = dma.done [#allocation10], 16
    $region53: #{tpu_custom_call.1} parent=1 // pred_fallthru
      _
    %154 = vsyncpa [#allocation4], 1
    %155 = vsyncpa [#allocation7], 1
    %156 = vsyncpa [#allocation5], 1
    %157 = vsyncpa [#allocation10], 1

</llo_original>
